<compile_context>
chip_gen: v7x
topology: tpu7x:2x2x1
jax: 0.10.0
libtpu: 0.0.40
codegen_flags: <defaults>
</compile_context>

<pallas_src>
import jax
import jax.numpy as jnp
from jax.experimental import pallas as pl
from jax.experimental.pallas import tpu as pltpu

INPUT_SIZE = 243
HIDDEN = (256, 128, 64)
OUTPUT_SIZE = 5

# Lane-aligned (padded) dims used inside the kernel.
F_PAD = 256     # 243 -> 256
H1 = 256
H2 = 128
H3_PAD = 128    # 64 -> 128
OUT_PAD = 128   # 5 -> 128

DEFAULT_TB = 256  # batch tile (rows per grid step)


def _round_up(n, m):
    return ((n + m - 1) // m) * m


def bc_mlp_kernel(x_ref,
                  w1_ref, b1_ref,
                  w2_ref, b2_ref,
                  w3_ref, b3_ref,
                  w4_ref, b4_ref,
                  o_ref):
    # Entire MLP hot path runs on VMEM-resident tiles; bf16 operands, f32 accumulation.
    x = x_ref[...]                                                       # (TB, 256) bf16

    h = jnp.dot(x, w1_ref[...], preferred_element_type=jnp.float32) + b1_ref[...]
    h = jnp.maximum(h, 0.0).astype(jnp.bfloat16)                         # (TB, 256)

    h = jnp.dot(h, w2_ref[...], preferred_element_type=jnp.float32) + b2_ref[...]
    h = jnp.maximum(h, 0.0).astype(jnp.bfloat16)                         # (TB, 128)

    h = jnp.dot(h, w3_ref[...], preferred_element_type=jnp.float32) + b3_ref[...]
    h = jnp.maximum(h, 0.0).astype(jnp.bfloat16)                         # (TB, 128) (cols 64..127 are zero)

    out = jnp.dot(h, w4_ref[...], preferred_element_type=jnp.float32) + b4_ref[...]
    o_ref[...] = out.astype(o_ref.dtype)                                 # (TB, 128)


def _prepare_padded_params(params):
    """Zero-pad weights/biases to lane-aligned shapes and cast weights to bf16 (biases stay f32)."""
    w1 = jnp.zeros((F_PAD, H1), jnp.float32).at[:INPUT_SIZE, :].set(params["w1"])
    b1 = params["b1"].astype(jnp.float32)                                # (1, 256)

    w2 = params["w2"].astype(jnp.float32)                                # (256, 128)
    b2 = params["b2"].astype(jnp.float32)                                # (1, 128)

    w3 = jnp.zeros((H2, H3_PAD), jnp.float32).at[:, :HIDDEN[2]].set(params["w3"])
    b3 = jnp.zeros((1, H3_PAD), jnp.float32).at[:, :HIDDEN[2]].set(params["b3"])

    w4 = jnp.zeros((H3_PAD, OUT_PAD), jnp.float32).at[:HIDDEN[2], :OUTPUT_SIZE].set(params["w4"])
    b4 = jnp.zeros((1, OUT_PAD), jnp.float32).at[:, :OUTPUT_SIZE].set(params["b4"])

    return (w1.astype(jnp.bfloat16), b1,
            w2.astype(jnp.bfloat16), b2,
            w3.astype(jnp.bfloat16), b3,
            w4.astype(jnp.bfloat16), b4)


def bc_model_forward(x, params, tb=DEFAULT_TB):
    """x: [B, 243] f32; params: dict of w1..w4 ([in,out]) and b1..b4 ([1,out]). Returns [B, 5] f32."""
    B = x.shape[0]

    # Batch tile: multiple of 8 (sublane), capped at `tb`; pad B up to a whole number of tiles.
    TB = min(tb, _round_up(B, 8))
    Bp = _round_up(B, TB)
    num_tiles = Bp // TB

    # Pad x to (Bp, 256) and cast to bf16 (one DMA-friendly, lane-dense slab).
    xp = jnp.zeros((Bp, F_PAD), jnp.float32).at[:B, :INPUT_SIZE].set(x).astype(jnp.bfloat16)

    # TODO(synk): in a real deployment pad/cast the weights once at load time, not per call.
    w1, b1, w2, b2, w3, b3, w4, b4 = _prepare_padded_params(params)

    # Weights/biases: constant index_map -> DMA'd once, VMEM-resident across grid steps.
    const = lambda a: pl.BlockSpec(a.shape, lambda i: (0,) * a.ndim)

    flops = 2 * Bp * (F_PAD * H1 + H1 * H2 + H2 * H3_PAD + H3_PAD * OUT_PAD)
    bytes_accessed = (xp.size * 2 + Bp * OUT_PAD * 4
                      + (w1.size + w2.size + w3.size + w4.size) * 2
                      + (b1.size + b2.size + b3.size + b4.size) * 4)

    out_padded = pl.pallas_call(
        bc_mlp_kernel,
        out_shape=jax.ShapeDtypeStruct((Bp, OUT_PAD), jnp.float32),
        grid=(num_tiles,),
        in_specs=[pl.BlockSpec((TB, F_PAD), lambda i: (i, 0)),
                  const(w1), const(b1),
                  const(w2), const(b2),
                  const(w3), const(b3),
                  const(w4), const(b4)],
        out_specs=pl.BlockSpec((TB, OUT_PAD), lambda i: (i, 0)),
        compiler_params=pltpu.CompilerParams(
            dimension_semantics=("parallel",),
            vmem_limit_bytes=32 * 1024 * 1024),
        cost_estimate=pl.CostEstimate(
            flops=flops, transcendentals=0, bytes_accessed=bytes_accessed),
    )(xp, w1, b1, w2, b2, w3, b3, w4, b4)

    # Strip batch padding and the zero-padded output lanes.
    return out_padded[:B, :OUTPUT_SIZE]


def init_params(key):
    """Deterministic init mirroring PyTorch nn.Linear default: U(-1/sqrt(fan_in), 1/sqrt(fan_in))."""
    dims = (INPUT_SIZE,) + HIDDEN + (OUTPUT_SIZE,)
    params = {}
    for i in range(4):
        fan_in, fan_out = dims[i], dims[i + 1]
        key, kw, kb = jax.random.split(key, 3)
        bound = 1.0 / jnp.sqrt(jnp.float32(fan_in))
        # Stored as [in, out] (transpose of torch's [out, in]) for x @ W.
        params[f"w{i+1}"] = jax.random.uniform(
            kw, (fan_in, fan_out), jnp.float32, minval=-bound, maxval=bound)
        params[f"b{i+1}"] = jax.random.uniform(
            kb, (1, fan_out), jnp.float32, minval=-bound, maxval=bound)
    return params


def reference_forward(x, params):
    h = jnp.maximum(x @ params["w1"] + params["b1"], 0.0)
    h = jnp.maximum(h @ params["w2"] + params["b2"], 0.0)
    h = jnp.maximum(h @ params["w3"] + params["b3"], 0.0)
    return h @ params["w4"] + params["b4"]


if __name__ == "__main__":
    key = jax.random.PRNGKey(0)
    key, kx = jax.random.split(key)

    B = 8
    x = jax.random.normal(kx, (B, INPUT_SIZE), jnp.float32)
    params = init_params(key)

    out = bc_model_forward(x, params)
    out = jax.block_until_ready(out)

    ref = reference_forward(x, params)
    assert out.shape == (B, OUTPUT_SIZE)
    # bf16 matmul operands (f32 accumulation) => looser tolerance vs. the f32 reference.
    assert jnp.allclose(out, ref, atol=5e-2, rtol=5e-2), (
        float(jnp.max(jnp.abs(out - ref))))

    # Equivalent of BCModel.predict: argmax over logits (plain JAX glue).
    _ = int(jnp.argmax(out[0]))

    print("KERNEL_OK")
</pallas_src>

<mosaic_0001>
module attributes {stable_mosaic.version = 11 : i64} {
  func.func @bc_mlp_kernel(%arg0: i32, %arg1: memref<8x256xbf16, #tpu.memory_space<vmem>>, %arg2: memref<256x256xbf16, #tpu.memory_space<vmem>>, %arg3: memref<1x256xf32, #tpu.memory_space<vmem>>, %arg4: memref<256x128xbf16, #tpu.memory_space<vmem>>, %arg5: memref<1x128xf32, #tpu.memory_space<vmem>>, %arg6: memref<128x128xbf16, #tpu.memory_space<vmem>>, %arg7: memref<1x128xf32, #tpu.memory_space<vmem>>, %arg8: memref<128x128xbf16, #tpu.memory_space<vmem>>, %arg9: memref<1x128xf32, #tpu.memory_space<vmem>>, %arg10: memref<8x128xf32, #tpu.memory_space<vmem>>) attributes {dimension_semantics = [#tpu.dimension_semantics<parallel>], iteration_bounds = array<i64: 1>, scalar_prefetch = 0 : i64, scratch_operands = 0 : i64, tpu.core_type = #tpu.core_type<tc>, window_params = [{transform_indices = @transform_0, window_bounds = array<i64: 8, 256>}, {pipeline_mode = #tpu.pipeline_mode<synchronous>, transform_indices = @transform_1, window_bounds = array<i64: 256, 256>}, {pipeline_mode = #tpu.pipeline_mode<synchronous>, transform_indices = @transform_2, window_bounds = array<i64: 1, 256>}, {pipeline_mode = #tpu.pipeline_mode<synchronous>, transform_indices = @transform_3, window_bounds = array<i64: 256, 128>}, {pipeline_mode = #tpu.pipeline_mode<synchronous>, transform_indices = @transform_4, window_bounds = array<i64: 1, 128>}, {pipeline_mode = #tpu.pipeline_mode<synchronous>, transform_indices = @transform_5, window_bounds = array<i64: 128, 128>}, {pipeline_mode = #tpu.pipeline_mode<synchronous>, transform_indices = @transform_6, window_bounds = array<i64: 1, 128>}, {pipeline_mode = #tpu.pipeline_mode<synchronous>, transform_indices = @transform_7, window_bounds = array<i64: 128, 128>}, {pipeline_mode = #tpu.pipeline_mode<synchronous>, transform_indices = @transform_8, window_bounds = array<i64: 1, 128>}, {transform_indices = @transform_9, window_bounds = array<i64: 8, 128>}]} {
    %c0 = arith.constant 0 : index
    %c0_0 = arith.constant 0 : index
    %0 = vector.load %arg1[%c0, %c0_0] : memref<8x256xbf16, #tpu.memory_space<vmem>>, vector<8x256xbf16>
    %c0_1 = arith.constant 0 : index
    %c0_2 = arith.constant 0 : index
    %1 = vector.load %arg2[%c0_1, %c0_2] : memref<256x256xbf16, #tpu.memory_space<vmem>>, vector<256x256xbf16>
    %cst = arith.constant dense<0.000000e+00> : vector<8x256xf32>
    %2 = tpu.matmul %0, %1, %cst {dimension_numbers = #tpu.dot_dimension_numbers<[1], [0], [0], [1], [0, 0, 1, 1], [], []>} : vector<8x256xbf16>, vector<256x256xbf16>, vector<8x256xf32> -> vector<8x256xf32>
    %c0_3 = arith.constant 0 : index
    %c0_4 = arith.constant 0 : index
    %3 = vector.load %arg3[%c0_3, %c0_4] : memref<1x256xf32, #tpu.memory_space<vmem>>, vector<1x256xf32>
    %4 = vector.broadcast %3 : vector<1x256xf32> to vector<8x256xf32>
    %5 = arith.addf %2, %4 : vector<8x256xf32>
    %cst_5 = arith.constant 0.000000e+00 : f32
    %6 = vector.broadcast %cst_5 : f32 to vector<8x256xf32>
    %7 = arith.maximumf %5, %6 : vector<8x256xf32>
    %8 = arith.truncf %7 : vector<8x256xf32> to vector<8x256xbf16>
    %c0_6 = arith.constant 0 : index
    %c0_7 = arith.constant 0 : index
    %9 = vector.load %arg4[%c0_6, %c0_7] : memref<256x128xbf16, #tpu.memory_space<vmem>>, vector<256x128xbf16>
    %cst_8 = arith.constant dense<0.000000e+00> : vector<8x128xf32>
    %10 = tpu.matmul %8, %9, %cst_8 {dimension_numbers = #tpu.dot_dimension_numbers<[1], [0], [0], [1], [0, 0, 1, 1], [], []>} : vector<8x256xbf16>, vector<256x128xbf16>, vector<8x128xf32> -> vector<8x128xf32>
    %c0_9 = arith.constant 0 : index
    %c0_10 = arith.constant 0 : index
    %11 = vector.load %arg5[%c0_9, %c0_10] : memref<1x128xf32, #tpu.memory_space<vmem>>, vector<1x128xf32>
    %12 = vector.broadcast %11 : vector<1x128xf32> to vector<8x128xf32>
    %13 = arith.addf %10, %12 : vector<8x128xf32>
    %cst_11 = arith.constant 0.000000e+00 : f32
    %14 = vector.broadcast %cst_11 : f32 to vector<8x128xf32>
    %15 = arith.maximumf %13, %14 : vector<8x128xf32>
    %16 = arith.truncf %15 : vector<8x128xf32> to vector<8x128xbf16>
    %c0_12 = arith.constant 0 : index
    %c0_13 = arith.constant 0 : index
    %17 = vector.load %arg6[%c0_12, %c0_13] : memref<128x128xbf16, #tpu.memory_space<vmem>>, vector<128x128xbf16>
    %cst_14 = arith.constant dense<0.000000e+00> : vector<8x128xf32>
    %18 = tpu.matmul %16, %17, %cst_14 {dimension_numbers = #tpu.dot_dimension_numbers<[1], [0], [0], [1], [0, 0, 1, 1], [], []>} : vector<8x128xbf16>, vector<128x128xbf16>, vector<8x128xf32> -> vector<8x128xf32>
    %c0_15 = arith.constant 0 : index
    %c0_16 = arith.constant 0 : index
    %19 = vector.load %arg7[%c0_15, %c0_16] : memref<1x128xf32, #tpu.memory_space<vmem>>, vector<1x128xf32>
    %20 = vector.broadcast %19 : vector<1x128xf32> to vector<8x128xf32>
    %21 = arith.addf %18, %20 : vector<8x128xf32>
    %cst_17 = arith.constant 0.000000e+00 : f32
    %22 = vector.broadcast %cst_17 : f32 to vector<8x128xf32>
    %23 = arith.maximumf %21, %22 : vector<8x128xf32>
    %24 = arith.truncf %23 : vector<8x128xf32> to vector<8x128xbf16>
    %c0_18 = arith.constant 0 : index
    %c0_19 = arith.constant 0 : index
    %25 = vector.load %arg8[%c0_18, %c0_19] : memref<128x128xbf16, #tpu.memory_space<vmem>>, vector<128x128xbf16>
    %cst_20 = arith.constant dense<0.000000e+00> : vector<8x128xf32>
    %26 = tpu.matmul %24, %25, %cst_20 {dimension_numbers = #tpu.dot_dimension_numbers<[1], [0], [0], [1], [0, 0, 1, 1], [], []>} : vector<8x128xbf16>, vector<128x128xbf16>, vector<8x128xf32> -> vector<8x128xf32>
    %c0_21 = arith.constant 0 : index
    %c0_22 = arith.constant 0 : index
    %27 = vector.load %arg9[%c0_21, %c0_22] : memref<1x128xf32, #tpu.memory_space<vmem>>, vector<1x128xf32>
    %28 = vector.broadcast %27 : vector<1x128xf32> to vector<8x128xf32>
    %29 = arith.addf %26, %28 : vector<8x128xf32>
    %c0_23 = arith.constant 0 : index
    %c0_24 = arith.constant 0 : index
    %30 = vector.load %arg10[%c0_23, %c0_24] : memref<8x128xf32, #tpu.memory_space<vmem>>, vector<8x128xf32>
    tpu.vector_store %arg10[%c0_23, %c0_24], %29 {strides = array<i32>} : memref<8x128xf32, #tpu.memory_space<vmem>>, vector<8x128xf32>,
    return
  }
  func.func @transform_0(%arg0: i32) -> (i32, i32) {
    %c0_i32 = arith.constant 0 : i32
    %c0_i32_0 = arith.constant 0 : i32
    return %arg0, %c0_i32 : i32, i32
  }
  func.func @transform_1(%arg0: i32) -> (i32, i32) {
    %c0_i32 = arith.constant 0 : i32
    %c0_i32_0 = arith.constant 0 : i32
    %c0_i32_1 = arith.constant 0 : i32
    return %c0_i32, %c0_i32_0 : i32, i32
  }
  func.func @transform_2(%arg0: i32) -> (i32, i32) {
    %c0_i32 = arith.constant 0 : i32
    %c0_i32_0 = arith.constant 0 : i32
    %c0_i32_1 = arith.constant 0 : i32
    return %c0_i32, %c0_i32_0 : i32, i32
  }
  func.func @transform_3(%arg0: i32) -> (i32, i32) {
    %c0_i32 = arith.constant 0 : i32
    %c0_i32_0 = arith.constant 0 : i32
    %c0_i32_1 = arith.constant 0 : i32
    return %c0_i32, %c0_i32_0 : i32, i32
  }
  func.func @transform_4(%arg0: i32) -> (i32, i32) {
    %c0_i32 = arith.constant 0 : i32
    %c0_i32_0 = arith.constant 0 : i32
    %c0_i32_1 = arith.constant 0 : i32
    return %c0_i32, %c0_i32_0 : i32, i32
  }
  func.func @transform_5(%arg0: i32) -> (i32, i32) {
    %c0_i32 = arith.constant 0 : i32
    %c0_i32_0 = arith.constant 0 : i32
    %c0_i32_1 = arith.constant 0 : i32
    return %c0_i32, %c0_i32_0 : i32, i32
  }
  func.func @transform_6(%arg0: i32) -> (i32, i32) {
    %c0_i32 = arith.constant 0 : i32
    %c0_i32_0 = arith.constant 0 : i32
    %c0_i32_1 = arith.constant 0 : i32
    return %c0_i32, %c0_i32_0 : i32, i32
  }
  func.func @transform_7(%arg0: i32) -> (i32, i32) {
    %c0_i32 = arith.constant 0 : i32
    %c0_i32_0 = arith.constant 0 : i32
    %c0_i32_1 = arith.constant 0 : i32
    return %c0_i32, %c0_i32_0 : i32, i32
  }
  func.func @transform_8(%arg0: i32) -> (i32, i32) {
    %c0_i32 = arith.constant 0 : i32
    %c0_i32_0 = arith.constant 0 : i32
    %c0_i32_1 = arith.constant 0 : i32
    return %c0_i32, %c0_i32_0 : i32, i32
  }
  func.func @transform_9(%arg0: i32) -> (i32, i32) {
    %c0_i32 = arith.constant 0 : i32
    %c0_i32_0 = arith.constant 0 : i32
    return %arg0, %c0_i32 : i32, i32
  }
}

</mosaic_0001>

<llo_original>
// kernel: tpu_custom_call.1
$region0: #{tpu_custom_call.1}
  #allocation0 [shape = 'u32[]', space=smem, size = 0x4, offset = 0x4, fixed_abs, tag = 'smem constant byte address 0x4 - core index']
  #allocation1 [shape = 'u32[144,128]{1,0:T(1,128)}', space=vmem, size = 0x12000, scoped, tag = 'internal scratch']
  %s0 = inlined_call_operand.hbm [shape: bf16[8,256], index: 0, kind: input, shape index: {}]
  %s1 = inlined_call_operand.hbm [shape: bf16[256,256], index: 1, kind: input, shape index: {}]
  %s2 = inlined_call_operand.vmem [shape: f32[1,256], index: 2, kind: input, shape index: {}]
  %s3 = inlined_call_operand.hbm [shape: bf16[256,128], index: 3, kind: input, shape index: {}]
  %s4 = inlined_call_operand.vmem [shape: f32[1,128], index: 4, kind: input, shape index: {}]
  %s5 = inlined_call_operand.hbm [shape: bf16[128,128], index: 5, kind: input, shape index: {}]
  %s6 = inlined_call_operand.vmem [shape: f32[1,128], index: 6, kind: input, shape index: {}]
  %s7 = inlined_call_operand.hbm [shape: bf16[128,128], index: 7, kind: input, shape index: {}]
  %s8 = inlined_call_operand.vmem [shape: f32[1,128], index: 8, kind: input, shape index: {}]
  %s9 = inlined_call_operand.hbm [shape: f32[8,128], index: 9, kind: output, shape index: {}]
  %s10 = sld [smem:[#allocation0]]
  $region66: #{tpu_custom_call.1} parent=0
    _
  %s12 = ssub.s32 1, %s10
  %s13 = scalar_select 0, %s12, %s10
  $region1: #{tpu_custom_call.1} parent=0
    #allocation2 [shape = 'u8[4096]{0}', space=vmem, size = 0x1000, scoped, tag = 'input window, operand 0, single buffered']
    #allocation3 [shape = 's32[1]{0}', space=sflag, size = 0x4, scoped, tag = 'scoped memory for tpu_custom_call.1']
    #allocation4 [shape = 's32[1]{0}', space=sflag, size = 0x4, scoped, tag = 'scoped memory for tpu_custom_call.1']
    #allocation5 [shape = 'u8[131072]{0}', space=vmem, size = 0x20000, scoped, tag = 'input window, operand 1, single buffered']
    #allocation6 [shape = 's32[1]{0}', space=sflag, size = 0x4, scoped, tag = 'scoped memory for tpu_custom_call.1']
    #allocation7 [shape = 'u8[65536]{0}', space=vmem, size = 0x10000, scoped, tag = 'input window, operand 3, single buffered']
    #allocation8 [shape = 'u8[32768]{0}', space=vmem, size = 0x8000, scoped, tag = 'input window, operand 5, single buffered']
    #allocation9 [shape = 's32[1]{0}', space=sflag, size = 0x4, scoped, tag = 'scoped memory for tpu_custom_call.1']
    #allocation10 [shape = 'u8[32768]{0}', space=vmem, size = 0x8000, scoped, tag = 'input window, operand 7, single buffered']
    #allocation11 [shape = 'u8[4096]{0}', space=vmem, size = 0x1000, scoped, tag = 'output window, operand 0, single buffered']
    %14 = vsyncpa [#allocation3], 0
    %15 = vsyncpa [#allocation6], 0
    %16 = vsyncpa [#allocation9], 0
    %17 = vsyncpa [#allocation4], 0
    // Predicated region
    $region2: #{tpu_custom_call.1} parent=1 // pred_check
      _
    $region3: #{tpu_custom_call.1} parent=1 // pred_check_branch
      %19 = sbr.rel (0) target = $region5
    $region4: #{tpu_custom_call.1} parent=1 // pred_region
      %s21 = ssub.s32 128, 128
      %22 = vsyncadd [#allocation3], %s21
      %s24 = sshll.u32 [#allocation2], 4
      %s25 = int_to_ptr.vmem [resolvable:$true] %s24
      %27 = dma.hbm_to_vmem [thread:$0]  %s0, 128, %s25, [#allocation3]
    $region5: #{tpu_custom_call.1} parent=1 // pred_fallthru
      _
    // Predicated region
    $region6: #{tpu_custom_call.1} parent=1 // pred_check
      _
    $region7: #{tpu_custom_call.1} parent=1 // pred_check_branch
      %29 = sbr.rel (0) target = $region9
    $region8: #{tpu_custom_call.1} parent=1 // pred_region
      %s31 = ssub.s32 4096, 4096
      %32 = vsyncadd [#allocation6], %s31
      %s33 = sshll.u32 [#allocation5], 4
      %s34 = int_to_ptr.vmem [resolvable:$true] %s33
      %39 = dma.hbm_to_vmem [thread:$0]  %s1, 4096, %s34, [#allocation6], 128, 128, 8
    $region9: #{tpu_custom_call.1} parent=1 // pred_fallthru
      _
    // Predicated region
    $region10: #{tpu_custom_call.1} parent=1 // pred_check
      _
    $region11: #{tpu_custom_call.1} parent=1 // pred_check_branch
      %41 = sbr.rel (0) target = $region13
    $region12: #{tpu_custom_call.1} parent=1 // pred_region
      _
    $region13: #{tpu_custom_call.1} parent=1 // pred_fallthru
      _
    // Predicated region
    $region14: #{tpu_custom_call.1} parent=1 // pred_check
      _
    $region15: #{tpu_custom_call.1} parent=1 // pred_check_branch
      %43 = sbr.rel (0) target = $region17
    $region16: #{tpu_custom_call.1} parent=1 // pred_region
      %s45 = ssub.s32 2048, 2048
      %46 = vsyncadd [#allocation6], %s45
      %s47 = sshll.u32 [#allocation7], 4
      %s48 = int_to_ptr.vmem [resolvable:$true] %s47
      %53 = dma.hbm_to_vmem [thread:$0]  %s3, 2048, %s48, [#allocation6], 64, 64, 4
    $region17: #{tpu_custom_call.1} parent=1 // pred_fallthru
      _
    // Predicated region
    $region18: #{tpu_custom_call.1} parent=1 // pred_check
      _
    $region19: #{tpu_custom_call.1} parent=1 // pred_check_branch
      %55 = sbr.rel (0) target = $region21
    $region20: #{tpu_custom_call.1} parent=1 // pred_region
      _
    $region21: #{tpu_custom_call.1} parent=1 // pred_fallthru
      _
    // Predicated region
    $region22: #{tpu_custom_call.1} parent=1 // pred_check
      _
    $region23: #{tpu_custom_call.1} parent=1 // pred_check_branch
      %57 = sbr.rel (0) target = $region25
    $region24: #{tpu_custom_call.1} parent=1 // pred_region
      %s59 = ssub.s32 1024, 1024
      %60 = vsyncadd [#allocation9], %s59
      %s61 = sshll.u32 [#allocation8], 4
      %s62 = int_to_ptr.vmem [resolvable:$true] %s61
      %67 = dma.hbm_to_vmem [thread:$0]  %s5, 1024, %s62, [#allocation9], 64, 64, 4
    $region25: #{tpu_custom_call.1} parent=1 // pred_fallthru
      _
    // Predicated region
    $region26: #{tpu_custom_call.1} parent=1 // pred_check
      _
    $region27: #{tpu_custom_call.1} parent=1 // pred_check_branch
      %69 = sbr.rel (0) target = $region29
    $region28: #{tpu_custom_call.1} parent=1 // pred_region
      _
    $region29: #{tpu_custom_call.1} parent=1 // pred_fallthru
      _
    // Predicated region
    $region30: #{tpu_custom_call.1} parent=1 // pred_check
      _
    $region31: #{tpu_custom_call.1} parent=1 // pred_check_branch
      %71 = sbr.rel (0) target = $region33
    $region32: #{tpu_custom_call.1} parent=1 // pred_region
      %s73 = ssub.s32 1024, 1024
      %74 = vsyncadd [#allocation9], %s73
      %s75 = sshll.u32 [#allocation10], 4
      %s76 = int_to_ptr.vmem [resolvable:$true] %s75
      %81 = dma.hbm_to_vmem [thread:$0]  %s7, 1024, %s76, [#allocation9], 64, 64, 4
    $region33: #{tpu_custom_call.1} parent=1 // pred_fallthru
      _
    // Predicated region
    $region34: #{tpu_custom_call.1} parent=1 // pred_check
      _
    $region35: #{tpu_custom_call.1} parent=1 // pred_check_branch
      %83 = sbr.rel (0) target = $region37
    $region36: #{tpu_custom_call.1} parent=1 // pred_region
      _
    $region37: #{tpu_custom_call.1} parent=1 // pred_fallthru
      _
    // Predicated region
    $region38: #{tpu_custom_call.1} parent=1 // pred_check
      _
    $region39: #{tpu_custom_call.1} parent=1 // pred_check_branch
      %85 = sbr.rel (0) target = $region41
    $region40: #{tpu_custom_call.1} parent=1 // pred_region
      %86 = dma.done [#allocation3], 128
    $region41: #{tpu_custom_call.1} parent=1 // pred_fallthru
      _
    // Predicated region
    $region42: #{tpu_custom_call.1} parent=1 // pred_check
      _
    $region43: #{tpu_custom_call.1} parent=1 // pred_check_branch
      %88 = sbr.rel (0) target = $region45
    $region44: #{tpu_custom_call.1} parent=1 // pred_region
      %89 = dma.done [#allocation6], 4096
    $region45: #{tpu_custom_call.1} parent=1 // pred_fallthru
      _
    // Predicated region
    $region46: #{tpu_custom_call.1} parent=1 // pred_check
      _
    $region47: #{tpu_custom_call.1} parent=1 // pred_check_branch
      %91 = sbr.rel (0) target = $region49
    $region48: #{tpu_custom_call.1} parent=1 // pred_region
      %92 = dma.done [#allocation6], 2048
    $region49: #{tpu_custom_call.1} parent=1 // pred_fallthru
      _
    // Predicated region
    $region50: #{tpu_custom_call.1} parent=1 // pred_check
      _
    $region51: #{tpu_custom_call.1} parent=1 // pred_check_branch
      %94 = sbr.rel (0) target = $region53
    $region52: #{tpu_custom_call.1} parent=1 // pred_region
      %95 = dma.done [#allocation9], 1024
    $region53: #{tpu_custom_call.1} parent=1 // pred_fallthru
      _
    // Predicated region
    $region54: #{tpu_custom_call.1} parent=1 // pred_check
      _
    $region55: #{tpu_custom_call.1} parent=1 // pred_check_branch
      %97 = sbr.rel (0) target = $region57
    $region56: #{tpu_custom_call.1} parent=1 // pred_region
      %98 = dma.done [#allocation9], 1024
    $region57: #{tpu_custom_call.1} parent=1 // pred_fallthru
      _
    %v100 = vld [vmem:[#allocation2] sm:$0xff]
    %v101 = vld [vmem:[#allocation5] sm:$0xff]
    %v102 = vld [vmem:[#allocation5 + $0x8] sm:$0xff]
    %v103 = vld [vmem:[#allocation5 + $0x10] sm:$0xff]
    %v104 = vld [vmem:[#allocation5 + $0x18] sm:$0xff]
    %v105 = vld [vmem:[#allocation5 + $0x20] sm:$0xff]
    %v106 = vld [vmem:[#allocation5 + $0x28] sm:$0xff]
    %v107 = vld [vmem:[#allocation5 + $0x30] sm:$0xff]
    %v108 = vld [vmem:[#allocation5 + $0x38] sm:$0xff]
    %v109 = vld [vmem:[#allocation5 + $0x40] sm:$0xff]
    %v110 = vld [vmem:[#allocation5 + $0x48] sm:$0xff]
    %v111 = vld [vmem:[#allocation5 + $0x50] sm:$0xff]
    %v112 = vld [vmem:[#allocation5 + $0x58] sm:$0xff]
    %v113 = vld [vmem:[#allocation5 + $0x60] sm:$0xff]
    %v114 = vld [vmem:[#allocation5 + $0x68] sm:$0xff]
    %v115 = vld [vmem:[#allocation5 + $0x70] sm:$0xff]
    %v116 = vld [vmem:[#allocation5 + $0x78] sm:$0xff]
    %v117 = vld [vmem:[#allocation5 + $0x80] sm:$0xff]
    %v118 = vld [vmem:[#allocation5 + $0x88] sm:$0xff]
    %v119 = vld [vmem:[#allocation5 + $0x90] sm:$0xff]
    %v120 = vld [vmem:[#allocation5 + $0x98] sm:$0xff]
    %v121 = vld [vmem:[#allocation5 + $0xa0] sm:$0xff]
    %v122 = vld [vmem:[#allocation5 + $0xa8] sm:$0xff]
    %v123 = vld [vmem:[#allocation5 + $0xb0] sm:$0xff]
    %v124 = vld [vmem:[#allocation5 + $0xb8] sm:$0xff]
    %v125 = vld [vmem:[#allocation5 + $0xc0] sm:$0xff]
    %v126 = vld [vmem:[#allocation5 + $0xc8] sm:$0xff]
    %v127 = vld [vmem:[#allocation5 + $0xd0] sm:$0xff]
    %v128 = vld [vmem:[#allocation5 + $0xd8] sm:$0xff]
    %v129 = vld [vmem:[#allocation5 + $0xe0] sm:$0xff]
    %v130 = vld [vmem:[#allocation5 + $0xe8] sm:$0xff]
    %v131 = vld [vmem:[#allocation5 + $0xf0] sm:$0xff]
    %v132 = vld [vmem:[#allocation5 + $0xf8] sm:$0xff]
    %v133 = vld [vmem:[%s2] sm:$0x3]
    %v135 = vlaneseq
    %v136 = vshrl.u32 %v135, 7
    %v137 = vsub.s32 0, %v136
    %v138 = vrot.slane %v133, %v137
    %v139 = vlaneseq
    %v140 = vshrl.u32 %v139, 7
    %v141 = vsub.s32 1, %v140
    %v142 = vrot.slane %v133, %v141
    %v146 = vunpack.c.l.b16 %v100
    %v147 = vunpack.c.h.b16 %v100
    %v148 = vpack.c.b16 %v146, %v146
    %v149 = vpack.c.b16 %v147, %v147
    %v184 = vunpack.c.l.b16 %v101
    %v185 = vunpack.c.h.b16 %v101
    %v186 = vunpack.c.l.b16 %v102
    %v187 = vunpack.c.h.b16 %v102
    %v188 = vunpack.c.l.b16 %v103
    %v189 = vunpack.c.h.b16 %v103
    %v190 = vunpack.c.l.b16 %v104
    %v191 = vunpack.c.h.b16 %v104
    %v192 = vunpack.c.l.b16 %v105
    %v193 = vunpack.c.h.b16 %v105
    %v194 = vunpack.c.l.b16 %v106
    %v195 = vunpack.c.h.b16 %v106
    %v196 = vunpack.c.l.b16 %v107
    %v197 = vunpack.c.h.b16 %v107
    %v198 = vunpack.c.l.b16 %v108
    %v199 = vunpack.c.h.b16 %v108
    %v200 = vunpack.c.l.b16 %v109
    %v201 = vunpack.c.h.b16 %v109
    %v202 = vunpack.c.l.b16 %v110
    %v203 = vunpack.c.h.b16 %v110
    %v204 = vunpack.c.l.b16 %v111
    %v205 = vunpack.c.h.b16 %v111
    %v206 = vunpack.c.l.b16 %v112
    %v207 = vunpack.c.h.b16 %v112
    %v208 = vunpack.c.l.b16 %v113
    %v209 = vunpack.c.h.b16 %v113
    %v210 = vunpack.c.l.b16 %v114
    %v211 = vunpack.c.h.b16 %v114
    %v212 = vunpack.c.l.b16 %v115
    %v213 = vunpack.c.h.b16 %v115
    %v214 = vunpack.c.l.b16 %v116
    %v215 = vunpack.c.h.b16 %v116
    %v216 = vunpack.c.l.b16 %v117
    %v217 = vunpack.c.h.b16 %v117
    %v218 = vunpack.c.l.b16 %v118
    %v219 = vunpack.c.h.b16 %v118
    %v220 = vunpack.c.l.b16 %v119
    %v221 = vunpack.c.h.b16 %v119
    %v222 = vunpack.c.l.b16 %v120
    %v223 = vunpack.c.h.b16 %v120
    %v224 = vunpack.c.l.b16 %v121
    %v225 = vunpack.c.h.b16 %v121
    %v226 = vunpack.c.l.b16 %v122
    %v227 = vunpack.c.h.b16 %v122
    %v228 = vunpack.c.l.b16 %v123
    %v229 = vunpack.c.h.b16 %v123
    %v230 = vunpack.c.l.b16 %v124
    %v231 = vunpack.c.h.b16 %v124
    %v232 = vunpack.c.l.b16 %v125
    %v233 = vunpack.c.h.b16 %v125
    %v234 = vunpack.c.l.b16 %v126
    %v235 = vunpack.c.h.b16 %v126
    %v236 = vunpack.c.l.b16 %v127
    %v237 = vunpack.c.h.b16 %v127
    %v238 = vunpack.c.l.b16 %v128
    %v239 = vunpack.c.h.b16 %v128
    %v240 = vunpack.c.l.b16 %v129
    %v241 = vunpack.c.h.b16 %v129
    %v242 = vunpack.c.l.b16 %v130
    %v243 = vunpack.c.h.b16 %v130
    %v244 = vunpack.c.l.b16 %v131
    %v245 = vunpack.c.h.b16 %v131
    %v246 = vunpack.c.l.b16 %v132
    %v247 = vunpack.c.h.b16 %v132
    %v248 = vpack.c.b16 %v186, %v184
    %v249 = vpack.c.b16 %v187, %v185
    %v250 = vpack.c.b16 %v190, %v188
    %v251 = vpack.c.b16 %v191, %v189
    %v252 = vpack.c.b16 %v194, %v192
    %v253 = vpack.c.b16 %v195, %v193
    %v254 = vpack.c.b16 %v198, %v196
    %v255 = vpack.c.b16 %v199, %v197
    %v256 = vpack.c.b16 %v202, %v200
    %v257 = vpack.c.b16 %v203, %v201
    %v258 = vpack.c.b16 %v206, %v204
    %v259 = vpack.c.b16 %v207, %v205
    %v260 = vpack.c.b16 %v210, %v208
    %v261 = vpack.c.b16 %v211, %v209
    %v262 = vpack.c.b16 %v214, %v212
    %v263 = vpack.c.b16 %v215, %v213
    %v264 = vpack.c.b16 %v218, %v216
    %v265 = vpack.c.b16 %v219, %v217
    %v266 = vpack.c.b16 %v222, %v220
    %v267 = vpack.c.b16 %v223, %v221
    %v268 = vpack.c.b16 %v226, %v224
    %v269 = vpack.c.b16 %v227, %v225
    %v270 = vpack.c.b16 %v230, %v228
    %v271 = vpack.c.b16 %v231, %v229
    %v272 = vpack.c.b16 %v234, %v232
    %v273 = vpack.c.b16 %v235, %v233
    %v274 = vpack.c.b16 %v238, %v236
    %v275 = vpack.c.b16 %v239, %v237
    %v276 = vpack.c.b16 %v242, %v240
    %v277 = vpack.c.b16 %v243, %v241
    %v278 = vpack.c.b16 %v246, %v244
    %v279 = vpack.c.b16 %v247, %v245
    %312 = vmatprep.subr.bf16.mxu0 %v249
    %313 = vmatpush1.bf16.msra.mxu0 %v248
    %314 = vmatprep.subr.bf16.mxu0 %v251
    %315 = vmatpush1.bf16.msra.mxu0 %v250
    %316 = vmatprep.subr.bf16.mxu0 %v253
    %317 = vmatpush1.bf16.msra.mxu0 %v252
    %318 = vmatprep.subr.bf16.mxu0 %v255
    %319 = vmatpush1.bf16.msra.mxu0 %v254
    %320 = vmatprep.subr.bf16.mxu0 %v257
    %321 = vmatpush1.bf16.msra.mxu0 %v256
    %322 = vmatprep.subr.bf16.mxu0 %v259
    %323 = vmatpush1.bf16.msra.mxu0 %v258
    %324 = vmatprep.subr.bf16.mxu0 %v261
    %325 = vmatpush1.bf16.msra.mxu0 %v260
    %326 = vmatprep.subr.bf16.mxu0 %v263
    %327 = vmatpush1.bf16.msra.mxu0 %v262
    %328 = vmatprep.subr.bf16.mxu0 %v265
    %329 = vmatpush1.bf16.msra.mxu0 %v264
    %330 = vmatprep.subr.bf16.mxu0 %v267
    %331 = vmatpush1.bf16.msra.mxu0 %v266
    %332 = vmatprep.subr.bf16.mxu0 %v269
    %333 = vmatpush1.bf16.msra.mxu0 %v268
    %334 = vmatprep.subr.bf16.mxu0 %v271
    %335 = vmatpush1.bf16.msra.mxu0 %v270
    %336 = vmatprep.subr.bf16.mxu0 %v273
    %337 = vmatpush1.bf16.msra.mxu0 %v272
    %338 = vmatprep.subr.bf16.mxu0 %v275
    %339 = vmatpush1.bf16.msra.mxu0 %v274
    %340 = vmatprep.subr.bf16.mxu0 %v277
    %341 = vmatpush1.bf16.msra.mxu0 %v276
    %342 = vmatprep.subr.bf16.mxu0 %v279
    %343 = vmatpush1.bf16.msra.mxu0 %v278
    %344 = vmatprep.mubr.bf16.mxu0 %v149
    %345 = vmatmul.mubr.bf16.gmra.mrb[0].mxu0 %v148
    %v346 = vpop.f32.mrb[0].mxu0
    %v347 = vadd.f32 %v138, %v346
    %v348 = vpop.f32.mrb[0].mxu0
    %v349 = vadd.f32 %v142, %v348
    %v350 = vpop.f32.mrb[0].mxu0
    %v351 = vpop.f32.mrb[0].mxu0
    %352 = vdwg.mxu0
    %v353 = vmax.f32 %v347, 0.0
    %v354 = vmax.f32 %v349, 0.0
    %v355 = vpack.c.bf16 %v353, %v353
    %v356 = vpack.c.bf16 %v354, %v354
    %v357 = vld [vmem:[#allocation7] sm:$0xf]
    %v358 = vld [vmem:[#allocation7 + $0x4] sm:$0xf]
    %v359 = vld [vmem:[#allocation7 + $0x8] sm:$0xf]
    %v360 = vld [vmem:[#allocation7 + $0xc] sm:$0xf]
    %v361 = vld [vmem:[#allocation7 + $0x10] sm:$0xf]
    %v362 = vld [vmem:[#allocation7 + $0x14] sm:$0xf]
    %v363 = vld [vmem:[#allocation7 + $0x18] sm:$0xf]
    %v364 = vld [vmem:[#allocation7 + $0x1c] sm:$0xf]
    %v365 = vld [vmem:[#allocation7 + $0x20] sm:$0xf]
    %v366 = vld [vmem:[#allocation7 + $0x24] sm:$0xf]
    %v367 = vld [vmem:[#allocation7 + $0x28] sm:$0xf]
    %v368 = vld [vmem:[#allocation7 + $0x2c] sm:$0xf]
    %v369 = vld [vmem:[#allocation7 + $0x30] sm:$0xf]
    %v370 = vld [vmem:[#allocation7 + $0x34] sm:$0xf]
    %v371 = vld [vmem:[#allocation7 + $0x38] sm:$0xf]
    %v372 = vld [vmem:[#allocation7 + $0x3c] sm:$0xf]
    %v373 = vld [vmem:[#allocation7 + $0x40] sm:$0xf]
    %v374 = vld [vmem:[#allocation7 + $0x44] sm:$0xf]
    %v375 = vld [vmem:[#allocation7 + $0x48] sm:$0xf]
    %v376 = vld [vmem:[#allocation7 + $0x4c] sm:$0xf]
    %v377 = vld [vmem:[#allocation7 + $0x50] sm:$0xf]
    %v378 = vld [vmem:[#allocation7 + $0x54] sm:$0xf]
    %v379 = vld [vmem:[#allocation7 + $0x58] sm:$0xf]
    %v380 = vld [vmem:[#allocation7 + $0x5c] sm:$0xf]
    %v381 = vld [vmem:[#allocation7 + $0x60] sm:$0xf]
    %v382 = vld [vmem:[#allocation7 + $0x64] sm:$0xf]
    %v383 = vld [vmem:[#allocation7 + $0x68] sm:$0xf]
    %v384 = vld [vmem:[#allocation7 + $0x6c] sm:$0xf]
    %v385 = vld [vmem:[#allocation7 + $0x70] sm:$0xf]
    %v386 = vld [vmem:[#allocation7 + $0x74] sm:$0xf]
    %v387 = vld [vmem:[#allocation7 + $0x78] sm:$0xf]
    %v388 = vld [vmem:[#allocation7 + $0x7c] sm:$0xf]
    %v389 = vld [vmem:[%s4] sm:$0x1]
    %v391 = vlaneseq
    %v392 = vshrl.u32 %v391, 7
    %v393 = vsub.s32 0, %v392
    %v394 = vrot.slane %v389, %v393
    %v428 = vunpack.c.l.b16 %v357
    %v429 = vunpack.c.l.b16 %v358
    %v430 = vunpack.c.l.b16 %v359
    %v431 = vunpack.c.l.b16 %v360
    %v432 = vunpack.c.l.b16 %v361
    %v433 = vunpack.c.l.b16 %v362
    %v434 = vunpack.c.l.b16 %v363
    %v435 = vunpack.c.l.b16 %v364
    %v436 = vunpack.c.l.b16 %v365
    %v437 = vunpack.c.l.b16 %v366
    %v438 = vunpack.c.l.b16 %v367
    %v439 = vunpack.c.l.b16 %v368
    %v440 = vunpack.c.l.b16 %v369
    %v441 = vunpack.c.l.b16 %v370
    %v442 = vunpack.c.l.b16 %v371
    %v443 = vunpack.c.l.b16 %v372
    %v444 = vunpack.c.l.b16 %v373
    %v445 = vunpack.c.l.b16 %v374
    %v446 = vunpack.c.l.b16 %v375
    %v447 = vunpack.c.l.b16 %v376
    %v448 = vunpack.c.l.b16 %v377
    %v449 = vunpack.c.l.b16 %v378
    %v450 = vunpack.c.l.b16 %v379
    %v451 = vunpack.c.l.b16 %v380
    %v452 = vunpack.c.l.b16 %v381
    %v453 = vunpack.c.l.b16 %v382
    %v454 = vunpack.c.l.b16 %v383
    %v455 = vunpack.c.l.b16 %v384
    %v456 = vunpack.c.l.b16 %v385
    %v457 = vunpack.c.l.b16 %v386
    %v458 = vunpack.c.l.b16 %v387
    %v459 = vunpack.c.l.b16 %v388
    %v460 = vpack.c.b16 %v429, %v428
    %v461 = vpack.c.b16 %v431, %v430
    %v462 = vpack.c.b16 %v433, %v432
    %v463 = vpack.c.b16 %v435, %v434
    %v464 = vpack.c.b16 %v437, %v436
    %v465 = vpack.c.b16 %v439, %v438
    %v466 = vpack.c.b16 %v441, %v440
    %v467 = vpack.c.b16 %v443, %v442
    %v468 = vpack.c.b16 %v445, %v444
    %v469 = vpack.c.b16 %v447, %v446
    %v470 = vpack.c.b16 %v449, %v448
    %v471 = vpack.c.b16 %v451, %v450
    %v472 = vpack.c.b16 %v453, %v452
    %v473 = vpack.c.b16 %v455, %v454
    %v474 = vpack.c.b16 %v457, %v456
    %v475 = vpack.c.b16 %v459, %v458
    %492 = vmatprep.subr.bf16.mxu0 0
    %493 = vmatpush1.bf16.msra.mxu0 %v460
    %494 = vmatprep.subr.bf16.mxu0 0
    %495 = vmatpush1.bf16.msra.mxu0 %v461
    %496 = vmatprep.subr.bf16.mxu0 0
    %497 = vmatpush1.bf16.msra.mxu0 %v462
    %498 = vmatprep.subr.bf16.mxu0 0
    %499 = vmatpush1.bf16.msra.mxu0 %v463
    %500 = vmatprep.subr.bf16.mxu0 0
    %501 = vmatpush1.bf16.msra.mxu0 %v464
    %502 = vmatprep.subr.bf16.mxu0 0
    %503 = vmatpush1.bf16.msra.mxu0 %v465
    %504 = vmatprep.subr.bf16.mxu0 0
    %505 = vmatpush1.bf16.msra.mxu0 %v466
    %506 = vmatprep.subr.bf16.mxu0 0
    %507 = vmatpush1.bf16.msra.mxu0 %v467
    %508 = vmatprep.subr.bf16.mxu0 0
    %509 = vmatpush1.bf16.msra.mxu0 %v468
    %510 = vmatprep.subr.bf16.mxu0 0
    %511 = vmatpush1.bf16.msra.mxu0 %v469
    %512 = vmatprep.subr.bf16.mxu0 0
    %513 = vmatpush1.bf16.msra.mxu0 %v470
    %514 = vmatprep.subr.bf16.mxu0 0
    %515 = vmatpush1.bf16.msra.mxu0 %v471
    %516 = vmatprep.subr.bf16.mxu0 0
    %517 = vmatpush1.bf16.msra.mxu0 %v472
    %518 = vmatprep.subr.bf16.mxu0 0
    %519 = vmatpush1.bf16.msra.mxu0 %v473
    %520 = vmatprep.subr.bf16.mxu0 0
    %521 = vmatpush1.bf16.msra.mxu0 %v474
    %522 = vmatprep.subr.bf16.mxu0 0
    %523 = vmatpush1.bf16.msra.mxu0 %v475
    %524 = vmatprep.mubr.bf16.mxu0 %v356
    %525 = vmatmul.mubr.bf16.gmra.mrb[0].mxu0 %v355
    %v526 = vpop.f32.mrb[0].mxu0
    %v527 = vadd.f32 %v394, %v526
    %v528 = vpop.f32.mrb[0].mxu0
    %v529 = vpop.f32.mrb[0].mxu0
    %v530 = vpop.f32.mrb[0].mxu0
    %531 = vdwg.mxu0
    %v532 = vmax.f32 %v527, 0.0
    %v533 = vpack.c.bf16 %v532, %v532
    %v534 = vld [vmem:[#allocation8] sm:$0xf]
    %v535 = vld [vmem:[#allocation8 + $0x4] sm:$0xf]
    %v536 = vld [vmem:[#allocation8 + $0x8] sm:$0xf]
    %v537 = vld [vmem:[#allocation8 + $0xc] sm:$0xf]
    %v538 = vld [vmem:[#allocation8 + $0x10] sm:$0xf]
    %v539 = vld [vmem:[#allocation8 + $0x14] sm:$0xf]
    %v540 = vld [vmem:[#allocation8 + $0x18] sm:$0xf]
    %v541 = vld [vmem:[#allocation8 + $0x1c] sm:$0xf]
    %v542 = vld [vmem:[#allocation8 + $0x20] sm:$0xf]
    %v543 = vld [vmem:[#allocation8 + $0x24] sm:$0xf]
    %v544 = vld [vmem:[#allocation8 + $0x28] sm:$0xf]
    %v545 = vld [vmem:[#allocation8 + $0x2c] sm:$0xf]
    %v546 = vld [vmem:[#allocation8 + $0x30] sm:$0xf]
    %v547 = vld [vmem:[#allocation8 + $0x34] sm:$0xf]
    %v548 = vld [vmem:[#allocation8 + $0x38] sm:$0xf]
    %v549 = vld [vmem:[#allocation8 + $0x3c] sm:$0xf]
    %v550 = vld [vmem:[%s6] sm:$0x1]
    %v552 = vlaneseq
    %v553 = vshrl.u32 %v552, 7
    %v554 = vsub.s32 0, %v553
    %v555 = vrot.slane %v550, %v554
    %v573 = vunpack.c.l.b16 %v534
    %v574 = vunpack.c.l.b16 %v535
    %v575 = vunpack.c.l.b16 %v536
    %v576 = vunpack.c.l.b16 %v537
    %v577 = vunpack.c.l.b16 %v538
    %v578 = vunpack.c.l.b16 %v539
    %v579 = vunpack.c.l.b16 %v540
    %v580 = vunpack.c.l.b16 %v541
    %v581 = vunpack.c.l.b16 %v542
    %v582 = vunpack.c.l.b16 %v543
    %v583 = vunpack.c.l.b16 %v544
    %v584 = vunpack.c.l.b16 %v545
    %v585 = vunpack.c.l.b16 %v546
    %v586 = vunpack.c.l.b16 %v547
    %v587 = vunpack.c.l.b16 %v548
    %v588 = vunpack.c.l.b16 %v549
    %v589 = vpack.c.b16 %v574, %v573
    %v590 = vpack.c.b16 %v576, %v575
    %v591 = vpack.c.b16 %v578, %v577
    %v592 = vpack.c.b16 %v580, %v579
    %v593 = vpack.c.b16 %v582, %v581
    %v594 = vpack.c.b16 %v584, %v583
    %v595 = vpack.c.b16 %v586, %v585
    %v596 = vpack.c.b16 %v588, %v587
    %605 = vmatprep.subr.bf16.mxu0 0
    %606 = vmatpush1.bf16.msra.mxu0 %v589
    %607 = vmatprep.subr.bf16.mxu0 0
    %608 = vmatpush1.bf16.msra.mxu0 %v590
    %609 = vmatprep.subr.bf16.mxu0 0
    %610 = vmatpush1.bf16.msra.mxu0 %v591
    %611 = vmatprep.subr.bf16.mxu0 0
    %612 = vmatpush1.bf16.msra.mxu0 %v592
    %613 = vmatprep.subr.bf16.mxu0 0
    %614 = vmatpush1.bf16.msra.mxu0 %v593
    %615 = vmatprep.subr.bf16.mxu0 0
    %616 = vmatpush1.bf16.msra.mxu0 %v594
    %617 = vmatprep.subr.bf16.mxu0 0
    %618 = vmatpush1.bf16.msra.mxu0 %v595
    %619 = vmatprep.subr.bf16.mxu0 0
    %620 = vmatpush1.bf16.msra.mxu0 %v596
    %621 = vmatprep.subr.bf16.mxu0 0
    %622 = vmatpush1.bf16.msra.mxu0 0
    %623 = vmatprep.subr.bf16.mxu0 0
    %624 = vmatpush1.bf16.msra.mxu0 0
    %625 = vmatprep.subr.bf16.mxu0 0
    %626 = vmatpush1.bf16.msra.mxu0 0
    %627 = vmatprep.subr.bf16.mxu0 0
    %628 = vmatpush1.bf16.msra.mxu0 0
    %629 = vmatprep.subr.bf16.mxu0 0
    %630 = vmatpush1.bf16.msra.mxu0 0
    %631 = vmatprep.subr.bf16.mxu0 0
    %632 = vmatpush1.bf16.msra.mxu0 0
    %633 = vmatprep.subr.bf16.mxu0 0
    %634 = vmatpush1.bf16.msra.mxu0 0
    %635 = vmatprep.subr.bf16.mxu0 0
    %636 = vmatpush1.bf16.msra.mxu0 0
    %637 = vmatprep.mubr.bf16.mxu0 0
    %638 = vmatmul.mubr.bf16.gmra.mrb[0].mxu0 %v533
    %v639 = vpop.f32.mrb[0].mxu0
    %v640 = vadd.f32 %v555, %v639
    %v641 = vpop.f32.mrb[0].mxu0
    %v642 = vpop.f32.mrb[0].mxu0
    %v643 = vpop.f32.mrb[0].mxu0
    %644 = vdwg.mxu0
    %v645 = vmax.f32 %v640, 0.0
    %v646 = vpack.c.bf16 %v645, %v645
    %v647 = vld [vmem:[#allocation10] sm:$0xf]
    %v648 = vld [vmem:[#allocation10 + $0x4] sm:$0xf]
    %v649 = vld [vmem:[#allocation10 + $0x8] sm:$0xf]
    %v650 = vld [vmem:[#allocation10 + $0xc] sm:$0xf]
    %v651 = vld [vmem:[#allocation10 + $0x10] sm:$0xf]
    %v652 = vld [vmem:[#allocation10 + $0x14] sm:$0xf]
    %v653 = vld [vmem:[#allocation10 + $0x18] sm:$0xf]
    %v654 = vld [vmem:[#allocation10 + $0x1c] sm:$0xf]
    %v655 = vld [vmem:[#allocation10 + $0x20] sm:$0xf]
    %v656 = vld [vmem:[#allocation10 + $0x24] sm:$0xf]
    %v657 = vld [vmem:[#allocation10 + $0x28] sm:$0xf]
    %v658 = vld [vmem:[#allocation10 + $0x2c] sm:$0xf]
    %v659 = vld [vmem:[#allocation10 + $0x30] sm:$0xf]
    %v660 = vld [vmem:[#allocation10 + $0x34] sm:$0xf]
    %v661 = vld [vmem:[#allocation10 + $0x38] sm:$0xf]
    %v662 = vld [vmem:[#allocation10 + $0x3c] sm:$0xf]
    %v663 = vld [vmem:[%s8] sm:$0x1]
    %v665 = vlaneseq
    %v666 = vshrl.u32 %v665, 7
    %v667 = vsub.s32 0, %v666
    %v668 = vrot.slane %v663, %v667
    %v686 = vunpack.c.l.b16 %v647
    %v687 = vunpack.c.l.b16 %v648
    %v688 = vunpack.c.l.b16 %v649
    %v689 = vunpack.c.l.b16 %v650
    %v690 = vunpack.c.l.b16 %v651
    %v691 = vunpack.c.l.b16 %v652
    %v692 = vunpack.c.l.b16 %v653
    %v693 = vunpack.c.l.b16 %v654
    %v694 = vunpack.c.l.b16 %v655
    %v695 = vunpack.c.l.b16 %v656
    %v696 = vunpack.c.l.b16 %v657
    %v697 = vunpack.c.l.b16 %v658
    %v698 = vunpack.c.l.b16 %v659
    %v699 = vunpack.c.l.b16 %v660
    %v700 = vunpack.c.l.b16 %v661
    %v701 = vunpack.c.l.b16 %v662
    %v702 = vpack.c.b16 %v687, %v686
    %v703 = vpack.c.b16 %v689, %v688
    %v704 = vpack.c.b16 %v691, %v690
    %v705 = vpack.c.b16 %v693, %v692
    %v706 = vpack.c.b16 %v695, %v694
    %v707 = vpack.c.b16 %v697, %v696
    %v708 = vpack.c.b16 %v699, %v698
    %v709 = vpack.c.b16 %v701, %v700
    %718 = vmatprep.subr.bf16.mxu0 0
    %719 = vmatpush1.bf16.msra.mxu0 %v702
    %720 = vmatprep.subr.bf16.mxu0 0
    %721 = vmatpush1.bf16.msra.mxu0 %v703
    %722 = vmatprep.subr.bf16.mxu0 0
    %723 = vmatpush1.bf16.msra.mxu0 %v704
    %724 = vmatprep.subr.bf16.mxu0 0
    %725 = vmatpush1.bf16.msra.mxu0 %v705
    %726 = vmatprep.subr.bf16.mxu0 0
    %727 = vmatpush1.bf16.msra.mxu0 %v706
    %728 = vmatprep.subr.bf16.mxu0 0
    %729 = vmatpush1.bf16.msra.mxu0 %v707
    %730 = vmatprep.subr.bf16.mxu0 0
    %731 = vmatpush1.bf16.msra.mxu0 %v708
    %732 = vmatprep.subr.bf16.mxu0 0
    %733 = vmatpush1.bf16.msra.mxu0 %v709
    %734 = vmatprep.subr.bf16.mxu0 0
    %735 = vmatpush1.bf16.msra.mxu0 0
    %736 = vmatprep.subr.bf16.mxu0 0
    %737 = vmatpush1.bf16.msra.mxu0 0
    %738 = vmatprep.subr.bf16.mxu0 0
    %739 = vmatpush1.bf16.msra.mxu0 0
    %740 = vmatprep.subr.bf16.mxu0 0
    %741 = vmatpush1.bf16.msra.mxu0 0
    %742 = vmatprep.subr.bf16.mxu0 0
    %743 = vmatpush1.bf16.msra.mxu0 0
    %744 = vmatprep.subr.bf16.mxu0 0
    %745 = vmatpush1.bf16.msra.mxu0 0
    %746 = vmatprep.subr.bf16.mxu0 0
    %747 = vmatpush1.bf16.msra.mxu0 0
    %748 = vmatprep.subr.bf16.mxu0 0
    %749 = vmatpush1.bf16.msra.mxu0 0
    %750 = vmatprep.mubr.bf16.mxu0 0
    %751 = vmatmul.mubr.bf16.gmra.mrb[0].mxu0 %v646
    %v752 = vpop.f32.mrb[0].mxu0
    %v753 = vadd.f32 %v668, %v752
    %v754 = vpop.f32.mrb[0].mxu0
    %v755 = vpop.f32.mrb[0].mxu0
    %v756 = vpop.f32.mrb[0].mxu0
    %757 = vdwg.mxu0
    %758 = vst [vmem:[#allocation11] sm:$0xff] %v753
    // Predicated region
    $region58: #{tpu_custom_call.1} parent=1 // pred_check
      _
    $region59: #{tpu_custom_call.1} parent=1 // pred_check_branch
      %760 = sbr.rel (0) target = $region61
    $region60: #{tpu_custom_call.1} parent=1 // pred_region
      %s762 = ssub.s32 128, 128
      %763 = vsyncadd [#allocation4], %s762
      %s765 = sshll.u32 [#allocation11], 4
      %s766 = int_to_ptr.vmem [resolvable:$true] %s765
      %768 = dma.vmem_to_hbm [thread:$0]  %s766, 128, %s9, [#allocation4]
    $region61: #{tpu_custom_call.1} parent=1 // pred_fallthru
      _
    // Predicated region
    $region62: #{tpu_custom_call.1} parent=1 // pred_check
      _
    $region63: #{tpu_custom_call.1} parent=1 // pred_check_branch
      %770 = sbr.rel (0) target = $region65
    $region64: #{tpu_custom_call.1} parent=1 // pred_region
      %771 = dma.done [#allocation4], 128
    $region65: #{tpu_custom_call.1} parent=1 // pred_fallthru
      _
    %772 = vsyncpa [#allocation3], 1
    %773 = vsyncpa [#allocation6], 1
    %774 = vsyncpa [#allocation9], 1
    %775 = vsyncpa [#allocation4], 1

</llo_original>
